<compile_context>
chip_gen: v5e
topology: v5e:2x2
jax: 0.10.0
libtpu: 0.0.40
codegen_flags: <defaults>
</compile_context>

<pallas_src>
import jax
import jax.numpy as jnp
from jax.experimental import pallas as pl
from jax.experimental.pallas import tpu as pltpu  # noqa: F401  (TPU backend)


def _graph_conv_kernel(a_ref, x_ref, o_ref):
    # a_ref: (K*C, C)    pre-folded adjacency stack, rows = [A_0; A_1; ...]
    # x_ref: (C,  B*T)   all batch elements concatenated along the lane axis
    # o_ref: (K*C, B*T)  ReLU(A @ X); B*T multiple of 128 -> unmasked stores
    y = jnp.dot(a_ref[...], x_ref[...], preferred_element_type=jnp.float32)
    o_ref[...] = jnp.maximum(y, 0.0).astype(o_ref.dtype)


def graph_convolution_forward(x, adjacency, graph_kernel):
    """Pallas equivalent of MyGraphConvolution.forward -> (out, [])."""
    b, _, c, t = x.shape
    k = graph_kernel.shape[0]

    adjacency = adjacency.astype(jnp.float32)
    # L = diag(sum(A, 0)) - A ; tiny elementwise op in plain JAX (no launch).
    lap = jnp.diag(jnp.sum(adjacency, axis=0)) - adjacency

    # TODO(synk): torch.linalg.eig (general complex eigendecomposition) has no
    # Pallas/TPU equivalent; for the symmetric Laplacian of a symmetric
    # adjacency, jnp.linalg.eigh yields the same real eigenvector basis the
    # PyTorch code keeps after its float32 cast.  V diag(w) V^T is invariant
    # to eigenvector sign flips, but eigenvalue ORDERING differs from geev, so
    # a pretrained PyTorch graph_kernel is not bit-for-bit portable.
    _, e_vets = jnp.linalg.eigh(lap)
    v = e_vets.astype(jnp.float32)

    w2 = graph_kernel.reshape(k, c).astype(jnp.float32)

    # Pre-fold the full stacked adjacency A[k] = V diag(w_k) V^T once in the
    # wrapper (~20 KFLOP; XLA fuses it into the eigh epilogue).  The kernel
    # then ships a single (K*C, C) operand and does one matmul.
    adj_stack = jnp.einsum('il,kl,jl->kij', v, w2, v).reshape(k * c, c)

    # Fold the batch into the lane axis: (B, C, T) -> (C, B*T).
    x_flat = (x.reshape(b, c, t).astype(jnp.float32)
               .transpose(1, 0, 2).reshape(c, b * t))

    # Single grid-free pallas_call: whole (tiny) operands resident in VMEM,
    # one input/output DMA each, one MXU matmul, lane-dense output.
    out_flat = pl.pallas_call(
        _graph_conv_kernel,
        out_shape=jax.ShapeDtypeStruct((k * c, b * t), jnp.float32),
    )(adj_stack, x_flat)

    out = out_flat.reshape(k, c, b, t).transpose(2, 0, 1, 3)  # (B, K, C, T)
    return out, []


if __name__ == "__main__":
    key = jax.random.PRNGKey(0)
    B, K, C, T = 2, 5, 16, 128
    k_adj, k_x, k_w = jax.random.split(key, 3)

    # symmetric adjacency with zero diagonal (eigh assumes symmetry, matching
    # the intended undirected EEG channel graph in the PyTorch model)
    r = jax.random.uniform(k_adj, (C, C), dtype=jnp.float32)
    adjacency = (r + r.T) * 0.5
    adjacency = adjacency * (1.0 - jnp.eye(C, dtype=jnp.float32))

    # EEG-like input (B, 1, C, T)
    x = jax.random.normal(k_x, (B, 1, C, T), dtype=jnp.float32)

    # deterministic xavier_normal-style init of graph_kernel (K, 1, C), gain=1
    fan_in, fan_out = 1 * C, K * C
    std = (2.0 / (fan_in + fan_out)) ** 0.5
    graph_kernel = std * jax.random.normal(k_w, (K, 1, C), dtype=jnp.float32)

    out, aux = graph_convolution_forward(x, adjacency, graph_kernel)
    out = jax.block_until_ready(out)

    # plain-JAX reference using the same eigenvector basis
    lap = jnp.diag(jnp.sum(adjacency, axis=0)) - adjacency
    _, v_ref = jnp.linalg.eigh(lap)
    v_ref = v_ref.astype(jnp.float32)
    w2 = graph_kernel.reshape(K, C)
    adj_full = jnp.einsum('ij,kj,lj->kil', v_ref, w2, v_ref)        # (K, C, C)
    ref = jnp.maximum(
        jnp.einsum('kcl,blt->bkct', adj_full, x.reshape(B, C, T)), 0.0)

    assert out.shape == (B, K, C, T)
    assert aux == []
    assert jnp.allclose(out, ref, atol=1e-4, rtol=1e-4), "mismatch vs reference"
    print("KERNEL_OK")
</pallas_src>

<mosaic_0001>
module attributes {stable_mosaic.version = 11 : i64} {
  func.func @_graph_conv_kernel(%arg0: memref<80x16xf32, #tpu.memory_space<vmem>>, %arg1: memref<16x256xf32, #tpu.memory_space<vmem>>, %arg2: memref<80x256xf32, #tpu.memory_space<vmem>>) attributes {dimension_semantics = [], scalar_prefetch = 0 : i64, scratch_operands = 0 : i64, tpu.core_type = #tpu.core_type<tc>} {
    %c0 = arith.constant 0 : index
    %c0_0 = arith.constant 0 : index
    %0 = vector.load %arg0[%c0, %c0_0] : memref<80x16xf32, #tpu.memory_space<vmem>>, vector<80x16xf32>
    %c0_1 = arith.constant 0 : index
    %c0_2 = arith.constant 0 : index
    %1 = vector.load %arg1[%c0_1, %c0_2] : memref<16x256xf32, #tpu.memory_space<vmem>>, vector<16x256xf32>
    %cst = arith.constant dense<0.000000e+00> : vector<80x256xf32>
    %2 = tpu.matmul %0, %1, %cst {dimension_numbers = #tpu.dot_dimension_numbers<[1], [0], [0], [1], [0, 0, 1, 1], [], []>} : vector<80x16xf32>, vector<16x256xf32>, vector<80x256xf32> -> vector<80x256xf32>
    %cst_3 = arith.constant 0.000000e+00 : f32
    %3 = vector.broadcast %cst_3 : f32 to vector<80x256xf32>
    %4 = arith.maximumf %2, %3 : vector<80x256xf32>
    %c0_4 = arith.constant 0 : index
    %c0_5 = arith.constant 0 : index
    %5 = vector.load %arg2[%c0_4, %c0_5] : memref<80x256xf32, #tpu.memory_space<vmem>>, vector<80x256xf32>
    tpu.vector_store %arg2[%c0_4, %c0_5], %4 {strides = array<i32>} : memref<80x256xf32, #tpu.memory_space<vmem>>, vector<80x256xf32>,
    return
  }
}

</mosaic_0001>

<llo_original>
// kernel: tpu_custom_call.1
$region0: #{tpu_custom_call.1}
  #allocation0 [shape = 'u32[]', space=smem, size = 0x4, offset = 0x4, fixed_abs, tag = 'smem constant byte address 0x4 - core index']
  #allocation1 [shape = 'u32[72,128]{1,0:T(1,128)}', space=vmem, size = 0x9000, scoped, tag = 'internal scratch']
  %s0 = inlined_call_operand.vmem [shape: f32[80,16], index: 0, kind: input, shape index: {}]
  %s1 = inlined_call_operand.vmem [shape: f32[16,256], index: 1, kind: input, shape index: {}]
  %s2 = inlined_call_operand.hbm [shape: f32[80,256], index: 2, kind: output, shape index: {}]
  %s3 = sld [smem:[#allocation0]]
  $region18: #{tpu_custom_call.1} parent=0
    _
  %s5 = ssub.s32 1, %s3
  %s6 = scalar_select 0, %s5, %s3
  $region1: #{tpu_custom_call.1} parent=0
    #allocation2 [shape = 'u8[81920]{0}', space=vmem, size = 0x14000, scoped, tag = 'output window, operand 0, single buffered']
    #allocation3 [shape = 's32[1]{0}', space=sflag, size = 0x4, scoped, tag = 'scoped memory for tpu_custom_call.1']
    %7 = vsyncpa [#allocation3], 0
    // Predicated region
    $region2: #{tpu_custom_call.1} parent=1 // pred_check
      _
    $region3: #{tpu_custom_call.1} parent=1 // pred_check_branch
      %9 = sbr.rel (0) target = $region5
    $region4: #{tpu_custom_call.1} parent=1 // pred_region
      _
    $region5: #{tpu_custom_call.1} parent=1 // pred_fallthru
      _
    // Predicated region
    $region6: #{tpu_custom_call.1} parent=1 // pred_check
      _
    $region7: #{tpu_custom_call.1} parent=1 // pred_check_branch
      %11 = sbr.rel (0) target = $region9
    $region8: #{tpu_custom_call.1} parent=1 // pred_region
      _
    $region9: #{tpu_custom_call.1} parent=1 // pred_fallthru
      _
    %v12 = vld [vmem:[%s0] sm:$0xff]
    %v13 = vld [vmem:[%s0 + $0x8] sm:$0xff]
    %v14 = vld [vmem:[%s0 + $0x10] sm:$0xff]
    %v15 = vld [vmem:[%s0 + $0x18] sm:$0xff]
    %v16 = vld [vmem:[%s0 + $0x20] sm:$0xff]
    %v17 = vld [vmem:[%s0 + $0x28] sm:$0xff]
    %v18 = vld [vmem:[%s0 + $0x30] sm:$0xff]
    %v19 = vld [vmem:[%s0 + $0x38] sm:$0xff]
    %v20 = vld [vmem:[%s0 + $0x40] sm:$0xff]
    %v21 = vld [vmem:[%s0 + $0x48] sm:$0xff]
    %v22 = vld [vmem:[%s1] sm:$0xff]
    %v23 = vld [vmem:[%s1 + $0x8] sm:$0xff]
    %v24 = vld [vmem:[%s1 + $0x10] sm:$0xff]
    %v25 = vld [vmem:[%s1 + $0x18] sm:$0xff]
    %vm26 = vcmask 130048
    %v28 = vsel %vm26, %v12, 0
    %v31 = vsel %vm26, %v13, 0
    %v34 = vsel %vm26, %v14, 0
    %v37 = vsel %vm26, %v15, 0
    %v40 = vsel %vm26, %v16, 0
    %v43 = vsel %vm26, %v17, 0
    %v46 = vsel %vm26, %v18, 0
    %v49 = vsel %vm26, %v19, 0
    %v52 = vsel %vm26, %v20, 0
    %v55 = vsel %vm26, %v21, 0
    %57 = vmatpush.msra.mxu0 0.0
    %58 = vmatpush.msra.mxu0 0.0
    %59 = vmatpush.msra.mxu0 0.0
    %60 = vmatpush.msra.mxu0 0.0
    %61 = vmatpush.msra.mxu0 0.0
    %62 = vmatpush.msra.mxu0 0.0
    %63 = vmatpush.msra.mxu0 0.0
    %64 = vmatpush.msra.mxu0 0.0
    %65 = vmatpush.msra.mxu0 0.0
    %66 = vmatpush.msra.mxu0 0.0
    %67 = vmatpush.msra.mxu0 0.0
    %68 = vmatpush.msra.mxu0 0.0
    %69 = vmatpush.msra.mxu0 0.0
    %70 = vmatpush.msra.mxu0 0.0
    %71 = vmatpush.msra.mxu0 %v24
    %72 = vmatpush.msra.mxu0 %v22
    %73 = vmatmul.f32.gmra.mxu0 %v28
    %v74 = vpop.f32.mrf.mxu0
    %v75 = vadd.f32 0.0, %v74
    %76 = vmatmul.f32.gmra.mxu0 %v31
    %v77 = vpop.f32.mrf.mxu0
    %v78 = vadd.f32 0.0, %v77
    %79 = vmatmul.f32.gmra.mxu0 %v34
    %v80 = vpop.f32.mrf.mxu0
    %v81 = vadd.f32 0.0, %v80
    %82 = vmatmul.f32.gmra.mxu0 %v37
    %v83 = vpop.f32.mrf.mxu0
    %v84 = vadd.f32 0.0, %v83
    %85 = vmatmul.f32.gmra.mxu0 %v40
    %v86 = vpop.f32.mrf.mxu0
    %v87 = vadd.f32 0.0, %v86
    %88 = vmatmul.f32.gmra.mxu0 %v43
    %v89 = vpop.f32.mrf.mxu0
    %v90 = vadd.f32 0.0, %v89
    %91 = vmatmul.f32.gmra.mxu0 %v46
    %v92 = vpop.f32.mrf.mxu0
    %v93 = vadd.f32 0.0, %v92
    %94 = vmatmul.f32.gmra.mxu0 %v49
    %v95 = vpop.f32.mrf.mxu0
    %v96 = vadd.f32 0.0, %v95
    %97 = vmatmul.f32.gmra.mxu0 %v52
    %v98 = vpop.f32.mrf.mxu0
    %v99 = vadd.f32 0.0, %v98
    %100 = vmatmul.f32.gmra.mxu0 %v55
    %v101 = vpop.f32.mrf.mxu0
    %v102 = vadd.f32 0.0, %v101
    %103 = vdwg.mxu0
    %104 = vmatpush.msra.mxu0 0.0
    %105 = vmatpush.msra.mxu0 0.0
    %106 = vmatpush.msra.mxu0 0.0
    %107 = vmatpush.msra.mxu0 0.0
    %108 = vmatpush.msra.mxu0 0.0
    %109 = vmatpush.msra.mxu0 0.0
    %110 = vmatpush.msra.mxu0 0.0
    %111 = vmatpush.msra.mxu0 0.0
    %112 = vmatpush.msra.mxu0 0.0
    %113 = vmatpush.msra.mxu0 0.0
    %114 = vmatpush.msra.mxu0 0.0
    %115 = vmatpush.msra.mxu0 0.0
    %116 = vmatpush.msra.mxu0 0.0
    %117 = vmatpush.msra.mxu0 0.0
    %118 = vmatpush.msra.mxu0 %v25
    %119 = vmatpush.msra.mxu0 %v23
    %120 = vmatmul.f32.gmra.mxu0 %v28
    %v121 = vpop.f32.mrf.mxu0
    %v122 = vadd.f32 0.0, %v121
    %123 = vmatmul.f32.gmra.mxu0 %v31
    %v124 = vpop.f32.mrf.mxu0
    %v125 = vadd.f32 0.0, %v124
    %126 = vmatmul.f32.gmra.mxu0 %v34
    %v127 = vpop.f32.mrf.mxu0
    %v128 = vadd.f32 0.0, %v127
    %129 = vmatmul.f32.gmra.mxu0 %v37
    %v130 = vpop.f32.mrf.mxu0
    %v131 = vadd.f32 0.0, %v130
    %132 = vmatmul.f32.gmra.mxu0 %v40
    %v133 = vpop.f32.mrf.mxu0
    %v134 = vadd.f32 0.0, %v133
    %135 = vmatmul.f32.gmra.mxu0 %v43
    %v136 = vpop.f32.mrf.mxu0
    %v137 = vadd.f32 0.0, %v136
    %138 = vmatmul.f32.gmra.mxu0 %v46
    %v139 = vpop.f32.mrf.mxu0
    %v140 = vadd.f32 0.0, %v139
    %141 = vmatmul.f32.gmra.mxu0 %v49
    %v142 = vpop.f32.mrf.mxu0
    %v143 = vadd.f32 0.0, %v142
    %144 = vmatmul.f32.gmra.mxu0 %v52
    %v145 = vpop.f32.mrf.mxu0
    %v146 = vadd.f32 0.0, %v145
    %147 = vmatmul.f32.gmra.mxu0 %v55
    %v148 = vpop.f32.mrf.mxu0
    %v149 = vadd.f32 0.0, %v148
    %150 = vdwg.mxu0
    %v151 = vmax.f32 %v75, 0.0
    %v152 = vmax.f32 %v122, 0.0
    %v153 = vmax.f32 %v78, 0.0
    %v154 = vmax.f32 %v125, 0.0
    %v155 = vmax.f32 %v81, 0.0
    %v156 = vmax.f32 %v128, 0.0
    %v157 = vmax.f32 %v84, 0.0
    %v158 = vmax.f32 %v131, 0.0
    %v159 = vmax.f32 %v87, 0.0
    %v160 = vmax.f32 %v134, 0.0
    %v161 = vmax.f32 %v90, 0.0
    %v162 = vmax.f32 %v137, 0.0
    %v163 = vmax.f32 %v93, 0.0
    %v164 = vmax.f32 %v140, 0.0
    %v165 = vmax.f32 %v96, 0.0
    %v166 = vmax.f32 %v143, 0.0
    %v167 = vmax.f32 %v99, 0.0
    %v168 = vmax.f32 %v146, 0.0
    %v169 = vmax.f32 %v102, 0.0
    %v170 = vmax.f32 %v149, 0.0
    %171 = vst [vmem:[#allocation2] sm:$0xff] %v151
    %172 = vst [vmem:[#allocation2 + $0x8] sm:$0xff] %v152
    %173 = vst [vmem:[#allocation2 + $0x10] sm:$0xff] %v153
    %174 = vst [vmem:[#allocation2 + $0x18] sm:$0xff] %v154
    %175 = vst [vmem:[#allocation2 + $0x20] sm:$0xff] %v155
    %176 = vst [vmem:[#allocation2 + $0x28] sm:$0xff] %v156
    %177 = vst [vmem:[#allocation2 + $0x30] sm:$0xff] %v157
    %178 = vst [vmem:[#allocation2 + $0x38] sm:$0xff] %v158
    %179 = vst [vmem:[#allocation2 + $0x40] sm:$0xff] %v159
    %180 = vst [vmem:[#allocation2 + $0x48] sm:$0xff] %v160
    %181 = vst [vmem:[#allocation2 + $0x50] sm:$0xff] %v161
    %182 = vst [vmem:[#allocation2 + $0x58] sm:$0xff] %v162
    %183 = vst [vmem:[#allocation2 + $0x60] sm:$0xff] %v163
    %184 = vst [vmem:[#allocation2 + $0x68] sm:$0xff] %v164
    %185 = vst [vmem:[#allocation2 + $0x70] sm:$0xff] %v165
    %186 = vst [vmem:[#allocation2 + $0x78] sm:$0xff] %v166
    %187 = vst [vmem:[#allocation2 + $0x80] sm:$0xff] %v167
    %188 = vst [vmem:[#allocation2 + $0x88] sm:$0xff] %v168
    %189 = vst [vmem:[#allocation2 + $0x90] sm:$0xff] %v169
    %190 = vst [vmem:[#allocation2 + $0x98] sm:$0xff] %v170
    // Predicated region
    $region10: #{tpu_custom_call.1} parent=1 // pred_check
      _
    $region11: #{tpu_custom_call.1} parent=1 // pred_check_branch
      %192 = sbr.rel (0) target = $region13
    $region12: #{tpu_custom_call.1} parent=1 // pred_region
      %194 = vsyncadd [#allocation3], 0
      %s195 = sshll.u32 [#allocation2], 4
      %s196 = int_to_ptr.vmem [resolvable:$true] %s195
      %s197 = sshll.u32 %s2, 4
      %s198 = int_to_ptr.hbm [resolvable:$true] %s197
      %203 = dma.vmem_to_hbm [thread:$0]  %s196, 2560, %s198, [#allocation3], 256, 256, 16
    $region13: #{tpu_custom_call.1} parent=1 // pred_fallthru
      _
    // Predicated region
    $region14: #{tpu_custom_call.1} parent=1 // pred_check
      _
    $region15: #{tpu_custom_call.1} parent=1 // pred_check_branch
      %205 = sbr.rel (0) target = $region17
    $region16: #{tpu_custom_call.1} parent=1 // pred_region
      %207 = dma.done [#allocation3], 2560
    $region17: #{tpu_custom_call.1} parent=1 // pred_fallthru
      _
    %208 = vsyncpa [#allocation3], 1

</llo_original>
